<compile_context>
chip_gen: v5e
topology: v5e:2x2
jax: 0.10.0
libtpu: 0.0.40
codegen_flags: <defaults>
</compile_context>

<pallas_src>
import jax
import jax.numpy as jnp
from jax.experimental import pallas as pl
from jax.experimental.pallas import tpu as pltpu


def _round_up(x, m):
    return ((x + m - 1) // m) * m


def _tpu_caps():
    """(per-core VMEM bytes, TensorCores per chip), with conservative fallbacks."""
    vmem = 64 << 20          # v7x floor: never assume more without evidence
    cores = 1
    try:
        info = pltpu.get_tpu_info()
        vmem = int(getattr(info, "vmem_capacity_bytes", vmem))
        for name in ("num_tensorcores", "tensorcore_count", "num_cores", "core_count"):
            v = getattr(info, name, None)
            if v:
                cores = int(v)
                break
    except Exception:
        pass
    try:
        kind = jax.devices()[0].device_kind.lower()
        if "v7" in kind or "7x" in kind:
            cores = max(cores, 2)
    except Exception:
        pass
    return vmem, cores


def _model_kernel(tok_ref, cat_ref, tbl_ref, w_ref, b_ref, out_ref,
                  acc_t_ref, acc_c_ref):
    """One (batch block i, vocab block k) grid step.

    tbl_ref is the combined (text ++ categorical) embedding tile of width
    D + 1: the last column is the per-row "counts toward the text mean" flag,
    so the non-padding token count falls out of the same MXU matmul (exact,
    f32 accumulation).
    """
    Bt, S = tok_ref.shape
    NC = cat_ref.shape[1]
    Vt, W = tbl_ref.shape
    D = W - 1

    k = pl.program_id(1)
    nk = pl.num_programs(1)

    @pl.when(k == 0)
    def _init():
        acc_t_ref[...] = jnp.zeros_like(acc_t_ref)
        acc_c_ref[...] = jnp.zeros_like(acc_c_ref)

    # Offset the ids (small operand) instead of the iota (large operand).
    v_base = k * Vt
    tok = tok_ref[...] - v_base            # (Bt, S)  int32
    cat = cat_ref[...] - v_base            # (Bt, NC) int32
    iota = jax.lax.broadcasted_iota(jnp.int32, (Bt, Vt), 1)

    # Per-batch vocab-count tiles, one token at a time (statically unrolled):
    # plain full-vreg VPU compare+add, no 3-D intermediates, no cross-sublane
    # reduction.  Counts accumulate in f32 (exact; v5e has no bf16 VPU).
    def count_tile(ids, n):
        counts = jnp.zeros((Bt, Vt), jnp.float32)
        for s in range(n):
            counts = counts + (ids[:, s:s + 1] == iota).astype(jnp.float32)
        return counts

    t_counts = count_tile(tok, S)          # (Bt, Vt) token multiplicities
    c_counts = count_tile(cat, NC)         # (Bt, Vt) 0/1 categorical hits

    # Fused gather + pool: counts @ table.  bf16 LHS is exact for counts <= 256
    # (guard on S); two accumulating dots, no concat copy.
    lhs_dtype = jnp.bfloat16 if S <= 256 else jnp.float32
    tbl = tbl_ref[...]
    acc_t_ref[...] += jnp.dot(t_counts.astype(lhs_dtype), tbl,
                              preferred_element_type=jnp.float32)
    acc_c_ref[...] += jnp.dot(c_counts.astype(lhs_dtype), tbl,
                              preferred_element_type=jnp.float32)

    # Finalize: mean-pool text, add categorical sums, apply fc (lane-dense).
    @pl.when(k == nk - 1)
    def _finalize():
        acc_t = acc_t_ref[...]                        # (Bt, W) f32
        cnt = acc_t[:, D:D + 1]                       # non-zero-token count
        # cnt == 0 => every token row was zero => numerator is 0, matching
        # torch.nan_to_num(0/0) == 0.  Exact divide (runs once per batch block).
        x_in = acc_t / jnp.maximum(cnt, 1.0) + acc_c_ref[...]
        # Flag column of x_in is killed by the zero row of w_ref.
        out_ref[...] = (jnp.dot(x_in, w_ref[...],
                                preferred_element_type=jnp.float32)
                        + b_ref[...])


def pytorch_model_forward(tokens, cat_ids, params):
    """tokens: (B, S) int32; cat_ids: list of (B,) int32, one per categorical feature."""
    B, S = tokens.shape
    emb = params["emb"]                      # (V, D) f32, padding row is zero
    cat_tables = list(params["cat_tables"])  # list of (V_i, D) f32
    fc_w = params["fc_w"]                    # (C, D) f32 (torch Linear layout)
    fc_b = params["fc_b"]                    # (C,) f32
    V, D = emb.shape
    C = fc_w.shape[0]
    NC = len(cat_ids)

    vmem_cap, n_cores = _tpu_caps()
    big_vmem = vmem_cap >= (96 << 20)        # v5e/v6e (128 MiB) vs v7x (64 MiB)

    # ---- combined (text ++ categorical) table, width D+1 (flag column) ------
    # Tables feed the MXU in bf16 (explicit accuracy decision); counts / 0-1
    # flags are exact in bf16 and all accumulation is f32.
    tables = [emb] + cat_tables
    VT = sum(int(t.shape[0]) for t in tables)
    Vt = min(1024 if big_vmem else 512, _round_up(VT, 128))     # 128-lane aligned
    VT_pad = _round_up(VT, Vt)
    W = D + 1
    flag = (emb.sum(axis=-1) != 0).astype(emb.dtype)            # module semantics
    table = jnp.concatenate(tables, axis=0)                     # (VT, D)
    flag_col = jnp.zeros((VT, 1), table.dtype).at[:V, 0].set(flag)
    table = jnp.concatenate([table, flag_col], axis=1)          # (VT, W)
    table = jnp.pad(table, ((0, VT_pad - VT), (0, 0)))
    table_bf = table.astype(jnp.bfloat16)
    # TODO(synk): for very large vocabularies a manual-DMA row gather
    # (PrefetchScalarGridSpec) beats the dense counts matmul; only the dense
    # small/medium-vocab path is implemented here.

    # ---- batch tiling (>= 2 "parallel" blocks when chip has 2 TensorCores) --
    Bt = min(256 if big_vmem else 128, _round_up(B, 8))
    if n_cores >= 2 and B >= 16:
        Bt = min(Bt, _round_up((B + 1) // 2, 8))
    B_pad = _round_up(B, Bt)
    nb = B_pad // Bt
    nk = VT_pad // Vt

    # ---- 2-D lane-dense id tiles; padded batch rows = -1 (match nothing) ----
    tok2 = jnp.pad(tokens.astype(jnp.int32), ((0, B_pad - B), (0, 0)),
                   constant_values=-1)
    off = V
    cols = []
    for i, t in enumerate(cat_tables):       # offset ids into the combined table
        cols.append(cat_ids[i].astype(jnp.int32) + off)
        off += int(t.shape[0])
    cat2 = jnp.pad(jnp.stack(cols, axis=1), ((0, B_pad - B), (0, 0)),
                   constant_values=-1)

    # ---- lane-dense fc: pad num_classes to 128 lanes; flag row of W is zero --
    Cpad = _round_up(C, 128)
    w_t = jnp.zeros((W, Cpad), jnp.float32).at[:D, :C].set(fc_w.T)
    b2 = jnp.zeros((1, Cpad), jnp.float32).at[0, :C].set(fc_b)

    # ---- scheduling hints ----------------------------------------------------
    flops = int(2 * 2 * B_pad * VT_pad * W + 2 * B_pad * W * Cpad)
    bytes_accessed = int(nb * table_bf.size * 2 + tok2.size * 4 + cat2.size * 4
                         + w_t.size * 4 + b2.size * 4 + B_pad * Cpad * 4)
    cost = pl.CostEstimate(flops=flops, transcendentals=int(B_pad),
                           bytes_accessed=bytes_accessed)

    # Per-step VMEM: double-buffered tiles + accumulators + count transients,
    # clamped well under the physical per-core capacity (48 MiB cap on v7x).
    Wl = _round_up(W, 128)
    est = (2 * 4 * Bt * _round_up(S, 128)          # token tile (x2 buffers)
           + 2 * 4 * Bt * _round_up(NC, 128)       # categorical tile
           + 2 * 2 * Vt * Wl                       # table tile (bf16)
           + 2 * 4 * _round_up(W, 8) * Cpad        # fc weight
           + 2 * 4 * 8 * Cpad                      # fc bias
           + 2 * 4 * Bt * Cpad                     # output tile
           + 2 * 4 * Bt * Wl                       # f32 accumulators
           + 12 * Bt * Vt                          # count / iota transients
           + (4 << 20))                            # compiler scratch headroom
    vmem_limit = int(max(32 << 20,
                         min(vmem_cap - (16 << 20), max(32 << 20, 2 * est))))

    out = pl.pallas_call(
        _model_kernel,
        out_shape=jax.ShapeDtypeStruct((B_pad, Cpad), jnp.float32),
        grid=(nb, nk),
        in_specs=[
            pl.BlockSpec((Bt, S), lambda i, k: (i, 0)),       # token ids
            pl.BlockSpec((Bt, NC), lambda i, k: (i, 0)),      # categorical ids
            pl.BlockSpec((Vt, W), lambda i, k: (k, 0)),       # table tile (bf16)
            pl.BlockSpec((W, Cpad), lambda i, k: (0, 0)),     # fc weight (f32)
            pl.BlockSpec((1, Cpad), lambda i, k: (0, 0)),     # fc bias
        ],
        out_specs=pl.BlockSpec((Bt, Cpad), lambda i, k: (i, 0)),
        scratch_shapes=[pltpu.VMEM((Bt, W), jnp.float32),     # text sums (+count)
                        pltpu.VMEM((Bt, W), jnp.float32)],    # categorical sums
        compiler_params=pltpu.CompilerParams(
            dimension_semantics=("parallel", "arbitrary"),
            vmem_limit_bytes=vmem_limit),
        cost_estimate=cost,
    )(tok2, cat2, table_bf, w_t, b2)

    return out[:B, :C]


if __name__ == "__main__":
    key = jax.random.PRNGKey(0)
    B, S, D = 8, 16, 32          # batch, seq length, embedding_dim
    V = 64                       # text vocab_size
    C = 10                       # num_classes
    cat_vocab_sizes = [6, 10]    # len(mappings[var]) for each categorical feature
    padding_idx = 0

    keys = iter(jax.random.split(key, 10))
    emb = jax.random.normal(next(keys), (V, D), jnp.float32)
    emb = emb.at[padding_idx].set(0.0)   # nn.Embedding zeroes the padding row
    cat_tables = [jax.random.normal(next(keys), (vs, D), jnp.float32)
                  for vs in cat_vocab_sizes]
    bound = 1.0 / (D ** 0.5)
    fc_w = jax.random.uniform(next(keys), (C, D), jnp.float32, -bound, bound)
    fc_b = jax.random.uniform(next(keys), (C,), jnp.float32, -bound, bound)

    tokens = jax.random.randint(next(keys), (B, S), 0, V, jnp.int32)
    pad_mask = jax.random.bernoulli(next(keys), 0.3, (B, S))
    tokens = jnp.where(pad_mask, padding_idx, tokens)     # inject padding tokens
    cat_ids = [jax.random.randint(next(keys), (B,), 0, vs, jnp.int32)
               for vs in cat_vocab_sizes]

    params = dict(emb=emb, cat_tables=cat_tables, fc_w=fc_w, fc_b=fc_b)
    out = jax.block_until_ready(pytorch_model_forward(tokens, cat_ids, params))

    # Pure-JAX reference of the torch forward.  Embedding tables are quantized
    # to bf16 to match the kernel's MXU operand precision (counts/flags are
    # exact in bf16, accumulation is f32); the non-zero-token count uses the
    # f32 table (module semantics) and the mean uses an exact divide.  The
    # remaining tolerance covers f32 accumulation-order / MXU f32-pass
    # differences only (the approximate reciprocal of the previous version was
    # removed).
    emb_q = emb.astype(jnp.bfloat16).astype(jnp.float32)
    cat_q = [t.astype(jnp.bfloat16).astype(jnp.float32) for t in cat_tables]
    x1 = emb_q[tokens]                                     # (B, S, D)
    nz = (emb[tokens].sum(-1) != 0).sum(-1)                # (B,)
    x1 = jnp.nan_to_num(x1.sum(-2) / nz[:, None])          # (B, D)
    xc = sum(cat_q[i][cat_ids[i]] for i in range(len(cat_ids)))
    ref = (x1 + xc) @ fc_w.T + fc_b

    assert out.shape == (B, C)
    err = float(jnp.max(jnp.abs(out - ref)))
    assert jnp.allclose(out, ref, atol=5e-3, rtol=5e-3), f"max abs err {err}"
    print("KERNEL_OK")
</pallas_src>

<mosaic_0001>
module attributes {stable_mosaic.version = 11 : i64} {
  func.func @_model_kernel(%arg0: i32, %arg1: i32, %arg2: memref<8x16xi32, #tpu.memory_space<vmem>>, %arg3: memref<8x2xi32, #tpu.memory_space<vmem>>, %arg4: memref<128x33xbf16, #tpu.memory_space<vmem>>, %arg5: memref<33x128xf32, #tpu.memory_space<vmem>>, %arg6: memref<1x128xf32, #tpu.memory_space<vmem>>, %arg7: memref<8x128xf32, #tpu.memory_space<vmem>>, %arg8: memref<8x33xf32, #tpu.memory_space<vmem>>, %arg9: memref<8x33xf32, #tpu.memory_space<vmem>>) attributes {dimension_semantics = [#tpu.dimension_semantics<parallel>, #tpu.dimension_semantics<arbitrary>], iteration_bounds = array<i64: 1, 1>, scalar_prefetch = 0 : i64, scratch_operands = 2 : i64, tpu.core_type = #tpu.core_type<tc>, window_params = [{transform_indices = @transform_0, window_bounds = array<i64: 8, 16>}, {transform_indices = @transform_1, window_bounds = array<i64: 8, 2>}, {transform_indices = @transform_2, window_bounds = array<i64: 128, 33>}, {pipeline_mode = #tpu.pipeline_mode<synchronous>, transform_indices = @transform_3, window_bounds = array<i64: 33, 128>}, {pipeline_mode = #tpu.pipeline_mode<synchronous>, transform_indices = @transform_4, window_bounds = array<i64: 1, 128>}, {transform_indices = @transform_5, window_bounds = array<i64: 8, 128>}]} {
    %c0_i32 = arith.constant 0 : i32
    %0 = arith.cmpi eq, %arg1, %c0_i32 : i32
    %1 = arith.extui %0 : i1 to i32
    %c0_i32_0 = arith.constant 0 : i32
    %2 = arith.cmpi ne, %1, %c0_i32_0 : i32
    scf.if %2 {
      %cst_19 = arith.constant 0.000000e+00 : f32
      %135 = vector.broadcast %cst_19 : f32 to vector<8x33xf32>
      %c0_20 = arith.constant 0 : index
      %c0_21 = arith.constant 0 : index
      %136 = vector.load %arg8[%c0_20, %c0_21] : memref<8x33xf32, #tpu.memory_space<vmem>>, vector<8x33xf32>
      tpu.vector_store %arg8[%c0_20, %c0_21], %135 {strides = array<i32>} : memref<8x33xf32, #tpu.memory_space<vmem>>, vector<8x33xf32>,
      %cst_22 = arith.constant 0.000000e+00 : f32
      %137 = vector.broadcast %cst_22 : f32 to vector<8x33xf32>
      %c0_23 = arith.constant 0 : index
      %c0_24 = arith.constant 0 : index
      %138 = vector.load %arg9[%c0_23, %c0_24] : memref<8x33xf32, #tpu.memory_space<vmem>>, vector<8x33xf32>
      tpu.vector_store %arg9[%c0_23, %c0_24], %137 {strides = array<i32>} : memref<8x33xf32, #tpu.memory_space<vmem>>, vector<8x33xf32>,
    } else {
    }
    %c128_i32 = arith.constant 128 : i32
    %3 = arith.muli %arg1, %c128_i32 : i32
    %c0 = arith.constant 0 : index
    %c0_1 = arith.constant 0 : index
    %4 = vector.load %arg2[%c0, %c0_1] : memref<8x16xi32, #tpu.memory_space<vmem>>, vector<8x16xi32>
    %5 = vector.broadcast %3 : i32 to vector<8x16xi32>
    %6 = arith.subi %4, %5 : vector<8x16xi32>
    %c0_2 = arith.constant 0 : index
    %c0_3 = arith.constant 0 : index
    %7 = vector.load %arg3[%c0_2, %c0_3] : memref<8x2xi32, #tpu.memory_space<vmem>>, vector<8x2xi32>
    %8 = vector.broadcast %3 : i32 to vector<8x2xi32>
    %9 = arith.subi %7, %8 : vector<8x2xi32>
    %10 = tpu.iota {dimensions = array<i32: 1>} : vector<8x128xi32>
    %cst = arith.constant 0.000000e+00 : f32
    %11 = vector.broadcast %cst : f32 to vector<8x128xf32>
    %12 = vector.extract_strided_slice %6 {offsets = [0, 0], sizes = [8, 1], strides = [1, 1]} : vector<8x16xi32> to vector<8x1xi32>
    %13 = vector.broadcast %12 : vector<8x1xi32> to vector<8x128xi32>
    %14 = arith.cmpi eq, %13, %10 : vector<8x128xi32>
    %15 = arith.extui %14 : vector<8x128xi1> to vector<8x128xi32>
    %16 = arith.sitofp %15 : vector<8x128xi32> to vector<8x128xf32>
    %17 = arith.addf %11, %16 : vector<8x128xf32>
    %18 = vector.extract_strided_slice %6 {offsets = [0, 1], sizes = [8, 1], strides = [1, 1]} : vector<8x16xi32> to vector<8x1xi32>
    %19 = vector.broadcast %18 : vector<8x1xi32> to vector<8x128xi32>
    %20 = arith.cmpi eq, %19, %10 : vector<8x128xi32>
    %21 = arith.extui %20 : vector<8x128xi1> to vector<8x128xi32>
    %22 = arith.sitofp %21 : vector<8x128xi32> to vector<8x128xf32>
    %23 = arith.addf %17, %22 : vector<8x128xf32>
    %24 = vector.extract_strided_slice %6 {offsets = [0, 2], sizes = [8, 1], strides = [1, 1]} : vector<8x16xi32> to vector<8x1xi32>
    %25 = vector.broadcast %24 : vector<8x1xi32> to vector<8x128xi32>
    %26 = arith.cmpi eq, %25, %10 : vector<8x128xi32>
    %27 = arith.extui %26 : vector<8x128xi1> to vector<8x128xi32>
    %28 = arith.sitofp %27 : vector<8x128xi32> to vector<8x128xf32>
    %29 = arith.addf %23, %28 : vector<8x128xf32>
    %30 = vector.extract_strided_slice %6 {offsets = [0, 3], sizes = [8, 1], strides = [1, 1]} : vector<8x16xi32> to vector<8x1xi32>
    %31 = vector.broadcast %30 : vector<8x1xi32> to vector<8x128xi32>
    %32 = arith.cmpi eq, %31, %10 : vector<8x128xi32>
    %33 = arith.extui %32 : vector<8x128xi1> to vector<8x128xi32>
    %34 = arith.sitofp %33 : vector<8x128xi32> to vector<8x128xf32>
    %35 = arith.addf %29, %34 : vector<8x128xf32>
    %36 = vector.extract_strided_slice %6 {offsets = [0, 4], sizes = [8, 1], strides = [1, 1]} : vector<8x16xi32> to vector<8x1xi32>
    %37 = vector.broadcast %36 : vector<8x1xi32> to vector<8x128xi32>
    %38 = arith.cmpi eq, %37, %10 : vector<8x128xi32>
    %39 = arith.extui %38 : vector<8x128xi1> to vector<8x128xi32>
    %40 = arith.sitofp %39 : vector<8x128xi32> to vector<8x128xf32>
    %41 = arith.addf %35, %40 : vector<8x128xf32>
    %42 = vector.extract_strided_slice %6 {offsets = [0, 5], sizes = [8, 1], strides = [1, 1]} : vector<8x16xi32> to vector<8x1xi32>
    %43 = vector.broadcast %42 : vector<8x1xi32> to vector<8x128xi32>
    %44 = arith.cmpi eq, %43, %10 : vector<8x128xi32>
    %45 = arith.extui %44 : vector<8x128xi1> to vector<8x128xi32>
    %46 = arith.sitofp %45 : vector<8x128xi32> to vector<8x128xf32>
    %47 = arith.addf %41, %46 : vector<8x128xf32>
    %48 = vector.extract_strided_slice %6 {offsets = [0, 6], sizes = [8, 1], strides = [1, 1]} : vector<8x16xi32> to vector<8x1xi32>
    %49 = vector.broadcast %48 : vector<8x1xi32> to vector<8x128xi32>
    %50 = arith.cmpi eq, %49, %10 : vector<8x128xi32>
    %51 = arith.extui %50 : vector<8x128xi1> to vector<8x128xi32>
    %52 = arith.sitofp %51 : vector<8x128xi32> to vector<8x128xf32>
    %53 = arith.addf %47, %52 : vector<8x128xf32>
    %54 = vector.extract_strided_slice %6 {offsets = [0, 7], sizes = [8, 1], strides = [1, 1]} : vector<8x16xi32> to vector<8x1xi32>
    %55 = vector.broadcast %54 : vector<8x1xi32> to vector<8x128xi32>
    %56 = arith.cmpi eq, %55, %10 : vector<8x128xi32>
    %57 = arith.extui %56 : vector<8x128xi1> to vector<8x128xi32>
    %58 = arith.sitofp %57 : vector<8x128xi32> to vector<8x128xf32>
    %59 = arith.addf %53, %58 : vector<8x128xf32>
    %60 = vector.extract_strided_slice %6 {offsets = [0, 8], sizes = [8, 1], strides = [1, 1]} : vector<8x16xi32> to vector<8x1xi32>
    %61 = vector.broadcast %60 : vector<8x1xi32> to vector<8x128xi32>
    %62 = arith.cmpi eq, %61, %10 : vector<8x128xi32>
    %63 = arith.extui %62 : vector<8x128xi1> to vector<8x128xi32>
    %64 = arith.sitofp %63 : vector<8x128xi32> to vector<8x128xf32>
    %65 = arith.addf %59, %64 : vector<8x128xf32>
    %66 = vector.extract_strided_slice %6 {offsets = [0, 9], sizes = [8, 1], strides = [1, 1]} : vector<8x16xi32> to vector<8x1xi32>
    %67 = vector.broadcast %66 : vector<8x1xi32> to vector<8x128xi32>
    %68 = arith.cmpi eq, %67, %10 : vector<8x128xi32>
    %69 = arith.extui %68 : vector<8x128xi1> to vector<8x128xi32>
    %70 = arith.sitofp %69 : vector<8x128xi32> to vector<8x128xf32>
    %71 = arith.addf %65, %70 : vector<8x128xf32>
    %72 = vector.extract_strided_slice %6 {offsets = [0, 10], sizes = [8, 1], strides = [1, 1]} : vector<8x16xi32> to vector<8x1xi32>
    %73 = vector.broadcast %72 : vector<8x1xi32> to vector<8x128xi32>
    %74 = arith.cmpi eq, %73, %10 : vector<8x128xi32>
    %75 = arith.extui %74 : vector<8x128xi1> to vector<8x128xi32>
    %76 = arith.sitofp %75 : vector<8x128xi32> to vector<8x128xf32>
    %77 = arith.addf %71, %76 : vector<8x128xf32>
    %78 = vector.extract_strided_slice %6 {offsets = [0, 11], sizes = [8, 1], strides = [1, 1]} : vector<8x16xi32> to vector<8x1xi32>
    %79 = vector.broadcast %78 : vector<8x1xi32> to vector<8x128xi32>
    %80 = arith.cmpi eq, %79, %10 : vector<8x128xi32>
    %81 = arith.extui %80 : vector<8x128xi1> to vector<8x128xi32>
    %82 = arith.sitofp %81 : vector<8x128xi32> to vector<8x128xf32>
    %83 = arith.addf %77, %82 : vector<8x128xf32>
    %84 = vector.extract_strided_slice %6 {offsets = [0, 12], sizes = [8, 1], strides = [1, 1]} : vector<8x16xi32> to vector<8x1xi32>
    %85 = vector.broadcast %84 : vector<8x1xi32> to vector<8x128xi32>
    %86 = arith.cmpi eq, %85, %10 : vector<8x128xi32>
    %87 = arith.extui %86 : vector<8x128xi1> to vector<8x128xi32>
    %88 = arith.sitofp %87 : vector<8x128xi32> to vector<8x128xf32>
    %89 = arith.addf %83, %88 : vector<8x128xf32>
    %90 = vector.extract_strided_slice %6 {offsets = [0, 13], sizes = [8, 1], strides = [1, 1]} : vector<8x16xi32> to vector<8x1xi32>
    %91 = vector.broadcast %90 : vector<8x1xi32> to vector<8x128xi32>
    %92 = arith.cmpi eq, %91, %10 : vector<8x128xi32>
    %93 = arith.extui %92 : vector<8x128xi1> to vector<8x128xi32>
    %94 = arith.sitofp %93 : vector<8x128xi32> to vector<8x128xf32>
    %95 = arith.addf %89, %94 : vector<8x128xf32>
    %96 = vector.extract_strided_slice %6 {offsets = [0, 14], sizes = [8, 1], strides = [1, 1]} : vector<8x16xi32> to vector<8x1xi32>
    %97 = vector.broadcast %96 : vector<8x1xi32> to vector<8x128xi32>
    %98 = arith.cmpi eq, %97, %10 : vector<8x128xi32>
    %99 = arith.extui %98 : vector<8x128xi1> to vector<8x128xi32>
    %100 = arith.sitofp %99 : vector<8x128xi32> to vector<8x128xf32>
    %101 = arith.addf %95, %100 : vector<8x128xf32>
    %102 = vector.extract_strided_slice %6 {offsets = [0, 15], sizes = [8, 1], strides = [1, 1]} : vector<8x16xi32> to vector<8x1xi32>
    %103 = vector.broadcast %102 : vector<8x1xi32> to vector<8x128xi32>
    %104 = arith.cmpi eq, %103, %10 : vector<8x128xi32>
    %105 = arith.extui %104 : vector<8x128xi1> to vector<8x128xi32>
    %106 = arith.sitofp %105 : vector<8x128xi32> to vector<8x128xf32>
    %107 = arith.addf %101, %106 : vector<8x128xf32>
    %cst_4 = arith.constant 0.000000e+00 : f32
    %108 = vector.broadcast %cst_4 : f32 to vector<8x128xf32>
    %109 = vector.extract_strided_slice %9 {offsets = [0, 0], sizes = [8, 1], strides = [1, 1]} : vector<8x2xi32> to vector<8x1xi32>
    %110 = vector.broadcast %109 : vector<8x1xi32> to vector<8x128xi32>
    %111 = arith.cmpi eq, %110, %10 : vector<8x128xi32>
    %112 = arith.extui %111 : vector<8x128xi1> to vector<8x128xi32>
    %113 = arith.sitofp %112 : vector<8x128xi32> to vector<8x128xf32>
    %114 = arith.addf %108, %113 : vector<8x128xf32>
    %115 = vector.extract_strided_slice %9 {offsets = [0, 1], sizes = [8, 1], strides = [1, 1]} : vector<8x2xi32> to vector<8x1xi32>
    %116 = vector.broadcast %115 : vector<8x1xi32> to vector<8x128xi32>
    %117 = arith.cmpi eq, %116, %10 : vector<8x128xi32>
    %118 = arith.extui %117 : vector<8x128xi1> to vector<8x128xi32>
    %119 = arith.sitofp %118 : vector<8x128xi32> to vector<8x128xf32>
    %120 = arith.addf %114, %119 : vector<8x128xf32>
    %c0_5 = arith.constant 0 : index
    %c0_6 = arith.constant 0 : index
    %121 = vector.load %arg4[%c0_5, %c0_6] : memref<128x33xbf16, #tpu.memory_space<vmem>>, vector<128x33xbf16>
    %c0_7 = arith.constant 0 : index
    %c0_8 = arith.constant 0 : index
    %122 = vector.load %arg8[%c0_7, %c0_8] : memref<8x33xf32, #tpu.memory_space<vmem>>, vector<8x33xf32>
    %123 = arith.truncf %107 : vector<8x128xf32> to vector<8x128xbf16>
    %cst_9 = arith.constant dense<0.000000e+00> : vector<8x33xf32>
    %124 = tpu.matmul %123, %121, %cst_9 {dimension_numbers = #tpu.dot_dimension_numbers<[1], [0], [0], [1], [0, 0, 1, 1], [], []>} : vector<8x128xbf16>, vector<128x33xbf16>, vector<8x33xf32> -> vector<8x33xf32>
    %125 = arith.addf %122, %124 : vector<8x33xf32>
    %c0_10 = arith.constant 0 : index
    %c0_11 = arith.constant 0 : index
    %126 = vector.load %arg8[%c0_10, %c0_11] : memref<8x33xf32, #tpu.memory_space<vmem>>, vector<8x33xf32>
    tpu.vector_store %arg8[%c0_10, %c0_11], %125 {strides = array<i32>} : memref<8x33xf32, #tpu.memory_space<vmem>>, vector<8x33xf32>,
    %c0_12 = arith.constant 0 : index
    %c0_13 = arith.constant 0 : index
    %127 = vector.load %arg9[%c0_12, %c0_13] : memref<8x33xf32, #tpu.memory_space<vmem>>, vector<8x33xf32>
    %128 = arith.truncf %120 : vector<8x128xf32> to vector<8x128xbf16>
    %cst_14 = arith.constant dense<0.000000e+00> : vector<8x33xf32>
    %129 = tpu.matmul %128, %121, %cst_14 {dimension_numbers = #tpu.dot_dimension_numbers<[1], [0], [0], [1], [0, 0, 1, 1], [], []>} : vector<8x128xbf16>, vector<128x33xbf16>, vector<8x33xf32> -> vector<8x33xf32>
    %130 = arith.addf %127, %129 : vector<8x33xf32>
    %c0_15 = arith.constant 0 : index
    %c0_16 = arith.constant 0 : index
    %131 = vector.load %arg9[%c0_15, %c0_16] : memref<8x33xf32, #tpu.memory_space<vmem>>, vector<8x33xf32>
    tpu.vector_store %arg9[%c0_15, %c0_16], %130 {strides = array<i32>} : memref<8x33xf32, #tpu.memory_space<vmem>>, vector<8x33xf32>,
    %c0_i32_17 = arith.constant 0 : i32
    %132 = arith.cmpi eq, %arg1, %c0_i32_17 : i32
    %133 = arith.extui %132 : i1 to i32
    %c0_i32_18 = arith.constant 0 : i32
    %134 = arith.cmpi ne, %133, %c0_i32_18 : i32
    scf.if %134 {
      %c0_19 = arith.constant 0 : index
      %c0_20 = arith.constant 0 : index
      %135 = vector.load %arg8[%c0_19, %c0_20] : memref<8x33xf32, #tpu.memory_space<vmem>>, vector<8x33xf32>
      %136 = vector.extract_strided_slice %135 {offsets = [0, 32], sizes = [8, 1], strides = [1, 1]} : vector<8x33xf32> to vector<8x1xf32>
      %cst_21 = arith.constant 1.000000e+00 : f32
      %137 = vector.broadcast %cst_21 : f32 to vector<8x1xf32>
      %138 = arith.maximumf %136, %137 : vector<8x1xf32>
      %139 = vector.broadcast %138 : vector<8x1xf32> to vector<8x33xf32>
      %140 = arith.divf %135, %139 : vector<8x33xf32>
      %c0_22 = arith.constant 0 : index
      %c0_23 = arith.constant 0 : index
      %141 = vector.load %arg9[%c0_22, %c0_23] : memref<8x33xf32, #tpu.memory_space<vmem>>, vector<8x33xf32>
      %142 = arith.addf %140, %141 : vector<8x33xf32>
      %c0_24 = arith.constant 0 : index
      %c0_25 = arith.constant 0 : index
      %143 = vector.load %arg5[%c0_24, %c0_25] : memref<33x128xf32, #tpu.memory_space<vmem>>, vector<33x128xf32>
      %cst_26 = arith.constant dense<0.000000e+00> : vector<8x128xf32>
      %144 = tpu.matmul %142, %143, %cst_26 {dimension_numbers = #tpu.dot_dimension_numbers<[1], [0], [0], [1], [0, 0, 1, 1], [], []>} : vector<8x33xf32>, vector<33x128xf32>, vector<8x128xf32> -> vector<8x128xf32>
      %c0_27 = arith.constant 0 : index
      %c0_28 = arith.constant 0 : index
      %145 = vector.load %arg6[%c0_27, %c0_28] : memref<1x128xf32, #tpu.memory_space<vmem>>, vector<1x128xf32>
      %146 = vector.broadcast %145 : vector<1x128xf32> to vector<8x128xf32>
      %147 = arith.addf %144, %146 : vector<8x128xf32>
      %c0_29 = arith.constant 0 : index
      %c0_30 = arith.constant 0 : index
      %148 = vector.load %arg7[%c0_29, %c0_30] : memref<8x128xf32, #tpu.memory_space<vmem>>, vector<8x128xf32>
      tpu.vector_store %arg7[%c0_29, %c0_30], %147 {strides = array<i32>} : memref<8x128xf32, #tpu.memory_space<vmem>>, vector<8x128xf32>,
    } else {
    }
    return
  }
  func.func @transform_0(%arg0: i32, %arg1: i32) -> (i32, i32) {
    %c0_i32 = arith.constant 0 : i32
    %c0_i32_0 = arith.constant 0 : i32
    return %arg0, %c0_i32 : i32, i32
  }
  func.func @transform_1(%arg0: i32, %arg1: i32) -> (i32, i32) {
    %c0_i32 = arith.constant 0 : i32
    %c0_i32_0 = arith.constant 0 : i32
    return %arg0, %c0_i32 : i32, i32
  }
  func.func @transform_2(%arg0: i32, %arg1: i32) -> (i32, i32) {
    %c0_i32 = arith.constant 0 : i32
    %c0_i32_0 = arith.constant 0 : i32
    return %arg1, %c0_i32 : i32, i32
  }
  func.func @transform_3(%arg0: i32, %arg1: i32) -> (i32, i32) {
    %c0_i32 = arith.constant 0 : i32
    %c0_i32_0 = arith.constant 0 : i32
    %c0_i32_1 = arith.constant 0 : i32
    return %c0_i32, %c0_i32_0 : i32, i32
  }
  func.func @transform_4(%arg0: i32, %arg1: i32) -> (i32, i32) {
    %c0_i32 = arith.constant 0 : i32
    %c0_i32_0 = arith.constant 0 : i32
    %c0_i32_1 = arith.constant 0 : i32
    return %c0_i32, %c0_i32_0 : i32, i32
  }
  func.func @transform_5(%arg0: i32, %arg1: i32) -> (i32, i32) {
    %c0_i32 = arith.constant 0 : i32
    %c0_i32_0 = arith.constant 0 : i32
    return %arg0, %c0_i32 : i32, i32
  }
}

</mosaic_0001>

<llo_original>
// kernel: tpu_custom_call.1
$region0: #{tpu_custom_call.1}
  #allocation0 [shape = 'u32[]', space=smem, size = 0x4, offset = 0x4, fixed_abs, tag = 'smem constant byte address 0x4 - core index']
  #allocation1 [shape = 'u32[72,128]{1,0:T(1,128)}', space=vmem, size = 0x9000, scoped, tag = 'internal scratch']
  #allocation2 [shape = 'f32[8,33]{1,0:T(8,128)}', space=vmem, size = 0x1000, scoped, tag = 'scratch operand']
  #allocation3 [shape = 'f32[8,33]{1,0:T(8,128)}', space=vmem, size = 0x1000, scoped, tag = 'scratch operand']
  %s0 = inlined_call_operand.vmem [shape: s32[8,16], index: 0, kind: input, shape index: {}]
  %s1 = inlined_call_operand.vmem [shape: s32[8,2], index: 1, kind: input, shape index: {}]
  %s2 = inlined_call_operand.vmem [shape: bf16[128,33], index: 2, kind: input, shape index: {}]
  %s3 = inlined_call_operand.vmem [shape: f32[33,128], index: 3, kind: input, shape index: {}]
  %s4 = inlined_call_operand.vmem [shape: f32[1,128], index: 4, kind: input, shape index: {}]
  %s5 = inlined_call_operand.hbm [shape: f32[8,128], index: 5, kind: output, shape index: {}]
  %s6 = sld [smem:[#allocation0]]
  $region38: #{tpu_custom_call.1} parent=0
    _
  %s8 = ssub.s32 1, %s6
  %s9 = scalar_select 0, %s8, %s6
  $region1: #{tpu_custom_call.1} parent=0
    #allocation4 [shape = 'u8[4096]{0}', space=vmem, size = 0x1000, scoped, tag = 'output window, operand 0, single buffered']
    #allocation5 [shape = 's32[1]{0}', space=sflag, size = 0x4, scoped, tag = 'scoped memory for tpu_custom_call.1']
    %10 = vsyncpa [#allocation5], 0
    // Predicated region
    $region2: #{tpu_custom_call.1} parent=1 // pred_check
      _
    $region3: #{tpu_custom_call.1} parent=1 // pred_check_branch
      %12 = sbr.rel (0) target = $region5
    $region4: #{tpu_custom_call.1} parent=1 // pred_region
      _
    $region5: #{tpu_custom_call.1} parent=1 // pred_fallthru
      _
    // Predicated region
    $region6: #{tpu_custom_call.1} parent=1 // pred_check
      _
    $region7: #{tpu_custom_call.1} parent=1 // pred_check_branch
      %14 = sbr.rel (0) target = $region9
    $region8: #{tpu_custom_call.1} parent=1 // pred_region
      _
    $region9: #{tpu_custom_call.1} parent=1 // pred_fallthru
      _
    // Predicated region
    $region10: #{tpu_custom_call.1} parent=1 // pred_check
      _
    $region11: #{tpu_custom_call.1} parent=1 // pred_check_branch
      %16 = sbr.rel (0) target = $region13
    $region12: #{tpu_custom_call.1} parent=1 // pred_region
      _
    $region13: #{tpu_custom_call.1} parent=1 // pred_fallthru
      _
    // Predicated region
    $region14: #{tpu_custom_call.1} parent=1 // pred_check
      _
    $region15: #{tpu_custom_call.1} parent=1 // pred_check_branch
      %18 = sbr.rel (0) target = $region17
    $region16: #{tpu_custom_call.1} parent=1 // pred_region
      _
    $region17: #{tpu_custom_call.1} parent=1 // pred_fallthru
      _
    // Predicated region
    $region18: #{tpu_custom_call.1} parent=1 // pred_check
      _
    $region19: #{tpu_custom_call.1} parent=1 // pred_check_branch
      %20 = sbr.rel (0) target = $region21
    $region20: #{tpu_custom_call.1} parent=1 // pred_region
      _
    $region21: #{tpu_custom_call.1} parent=1 // pred_fallthru
      _
    %p21 = scmp.eq.s32.totalorder 0, 0
    // Predicated region
    $region22: #{tpu_custom_call.1} parent=1 // pred_check
      %p22 = pneg %p21
    $region23: #{tpu_custom_call.1} parent=1 // pred_check_branch
      %24 = sbr.rel (%p22) target = $region25
    $region24: #{tpu_custom_call.1} parent=1 // pred_region
      %vm25 = vcmask 269312
      %26 = vst.msk [vmem:[#allocation2] sm:$0xff] %vm25, 0.0
      %27 = vst.msk [vmem:[#allocation3] sm:$0xff] %vm25, 0.0
    $region25: #{tpu_custom_call.1} parent=1 // pred_fallthru
      _
    %s28 = smul.u32 0, 128
    %v29 = vld [vmem:[%s0] sm:$0xff]
    %v30 = vstv %s28
    %v31 = vsub.s32 %v29, %v30
    %v32 = vld [vmem:[%s1] sm:$0xff]
    %v33 = vsub.s32 %v32, %v30
    %v34 = vlaneseq
    %v35 = vand.u32 %v34, 127
    %36 = vset.pattern.permute.xlu0 0
    %37 = vperm.xlu0 %36, %v31
    %v38 = vpop.permute.xlu0 %37
    %vm39 = vcmp.eq.s32.totalorder %v38, %v35
    %v40 = vsel %vm39, 1, 0
    %v41 = vcvt.s32.f32 %v40
    %v42 = vadd.f32 %v41, 0.0
    %43 = vset.pattern.permute.xlu0 1
    %44 = vperm.xlu0 %43, %v31
    %v45 = vpop.permute.xlu0 %44
    %vm46 = vcmp.eq.s32.totalorder %v45, %v35
    %v47 = vsel %vm46, 1, 0
    %v48 = vcvt.s32.f32 %v47
    %v49 = vadd.f32 %v42, %v48
    %50 = vset.pattern.permute.xlu0 2
    %51 = vperm.xlu0 %50, %v31
    %v52 = vpop.permute.xlu0 %51
    %vm53 = vcmp.eq.s32.totalorder %v52, %v35
    %v54 = vsel %vm53, 1, 0
    %v55 = vcvt.s32.f32 %v54
    %v56 = vadd.f32 %v49, %v55
    %57 = vset.pattern.permute.xlu0 3
    %58 = vperm.xlu0 %57, %v31
    %v59 = vpop.permute.xlu0 %58
    %vm60 = vcmp.eq.s32.totalorder %v59, %v35
    %v61 = vsel %vm60, 1, 0
    %v62 = vcvt.s32.f32 %v61
    %v63 = vadd.f32 %v56, %v62
    %64 = vset.pattern.permute.xlu0 4
    %65 = vperm.xlu0 %64, %v31
    %v66 = vpop.permute.xlu0 %65
    %vm67 = vcmp.eq.s32.totalorder %v66, %v35
    %v68 = vsel %vm67, 1, 0
    %v69 = vcvt.s32.f32 %v68
    %v70 = vadd.f32 %v63, %v69
    %71 = vset.pattern.permute.xlu0 5
    %72 = vperm.xlu0 %71, %v31
    %v73 = vpop.permute.xlu0 %72
    %vm74 = vcmp.eq.s32.totalorder %v73, %v35
    %v75 = vsel %vm74, 1, 0
    %v76 = vcvt.s32.f32 %v75
    %v77 = vadd.f32 %v70, %v76
    %78 = vset.pattern.permute.xlu0 6
    %79 = vperm.xlu0 %78, %v31
    %v80 = vpop.permute.xlu0 %79
    %vm81 = vcmp.eq.s32.totalorder %v80, %v35
    %v82 = vsel %vm81, 1, 0
    %v83 = vcvt.s32.f32 %v82
    %v84 = vadd.f32 %v77, %v83
    %85 = vset.pattern.permute.xlu0 7
    %86 = vperm.xlu0 %85, %v31
    %v87 = vpop.permute.xlu0 %86
    %vm88 = vcmp.eq.s32.totalorder %v87, %v35
    %v89 = vsel %vm88, 1, 0
    %v90 = vcvt.s32.f32 %v89
    %v91 = vadd.f32 %v84, %v90
    %92 = vset.pattern.permute.xlu0 8
    %93 = vperm.xlu0 %92, %v31
    %v94 = vpop.permute.xlu0 %93
    %vm95 = vcmp.eq.s32.totalorder %v94, %v35
    %v96 = vsel %vm95, 1, 0
    %v97 = vcvt.s32.f32 %v96
    %v98 = vadd.f32 %v91, %v97
    %99 = vset.pattern.permute.xlu0 9
    %100 = vperm.xlu0 %99, %v31
    %v101 = vpop.permute.xlu0 %100
    %vm102 = vcmp.eq.s32.totalorder %v101, %v35
    %v103 = vsel %vm102, 1, 0
    %v104 = vcvt.s32.f32 %v103
    %v105 = vadd.f32 %v98, %v104
    %106 = vset.pattern.permute.xlu0 10
    %107 = vperm.xlu0 %106, %v31
    %v108 = vpop.permute.xlu0 %107
    %vm109 = vcmp.eq.s32.totalorder %v108, %v35
    %v110 = vsel %vm109, 1, 0
    %v111 = vcvt.s32.f32 %v110
    %v112 = vadd.f32 %v105, %v111
    %113 = vset.pattern.permute.xlu0 11
    %114 = vperm.xlu0 %113, %v31
    %v115 = vpop.permute.xlu0 %114
    %vm116 = vcmp.eq.s32.totalorder %v115, %v35
    %v117 = vsel %vm116, 1, 0
    %v118 = vcvt.s32.f32 %v117
    %v119 = vadd.f32 %v112, %v118
    %120 = vset.pattern.permute.xlu0 12
    %121 = vperm.xlu0 %120, %v31
    %v122 = vpop.permute.xlu0 %121
    %vm123 = vcmp.eq.s32.totalorder %v122, %v35
    %v124 = vsel %vm123, 1, 0
    %v125 = vcvt.s32.f32 %v124
    %v126 = vadd.f32 %v119, %v125
    %127 = vset.pattern.permute.xlu0 13
    %128 = vperm.xlu0 %127, %v31
    %v129 = vpop.permute.xlu0 %128
    %vm130 = vcmp.eq.s32.totalorder %v129, %v35
    %v131 = vsel %vm130, 1, 0
    %v132 = vcvt.s32.f32 %v131
    %v133 = vadd.f32 %v126, %v132
    %134 = vset.pattern.permute.xlu0 14
    %135 = vperm.xlu0 %134, %v31
    %v136 = vpop.permute.xlu0 %135
    %vm137 = vcmp.eq.s32.totalorder %v136, %v35
    %v138 = vsel %vm137, 1, 0
    %v139 = vcvt.s32.f32 %v138
    %v140 = vadd.f32 %v133, %v139
    %141 = vset.pattern.permute.xlu0 15
    %142 = vperm.xlu0 %141, %v31
    %v143 = vpop.permute.xlu0 %142
    %vm144 = vcmp.eq.s32.totalorder %v143, %v35
    %v145 = vsel %vm144, 1, 0
    %v146 = vcvt.s32.f32 %v145
    %v147 = vadd.f32 %v140, %v146
    %148 = vset.pattern.permute.xlu0 0
    %149 = vperm.xlu0 %148, %v33
    %v150 = vpop.permute.xlu0 %149
    %vm151 = vcmp.eq.s32.totalorder %v150, %v35
    %v152 = vsel %vm151, 1, 0
    %v153 = vcvt.s32.f32 %v152
    %v154 = vadd.f32 %v153, 0.0
    %155 = vset.pattern.permute.xlu0 1
    %156 = vperm.xlu0 %155, %v33
    %v157 = vpop.permute.xlu0 %156
    %vm158 = vcmp.eq.s32.totalorder %v157, %v35
    %v159 = vsel %vm158, 1, 0
    %v160 = vcvt.s32.f32 %v159
    %v161 = vadd.f32 %v154, %v160
    %v162 = vld [vmem:[%s2] sm:$0xf]
    %v163 = vld [vmem:[%s2 + $0x4] sm:$0xf]
    %v164 = vld [vmem:[%s2 + $0x8] sm:$0xf]
    %v165 = vld [vmem:[%s2 + $0xc] sm:$0xf]
    %v166 = vld [vmem:[%s2 + $0x10] sm:$0xf]
    %v167 = vld [vmem:[%s2 + $0x14] sm:$0xf]
    %v168 = vld [vmem:[%s2 + $0x18] sm:$0xf]
    %v169 = vld [vmem:[%s2 + $0x1c] sm:$0xf]
    %v170 = vld [vmem:[%s2 + $0x20] sm:$0xf]
    %v171 = vld [vmem:[%s2 + $0x24] sm:$0xf]
    %v172 = vld [vmem:[%s2 + $0x28] sm:$0xf]
    %v173 = vld [vmem:[%s2 + $0x2c] sm:$0xf]
    %v174 = vld [vmem:[%s2 + $0x30] sm:$0xf]
    %v175 = vld [vmem:[%s2 + $0x34] sm:$0xf]
    %v176 = vld [vmem:[%s2 + $0x38] sm:$0xf]
    %v177 = vld [vmem:[%s2 + $0x3c] sm:$0xf]
    %v178 = vld [vmem:[#allocation2] sm:$0xff]
    %v179 = vpack.c.bf16 %v147, %v147
    %v196 = vunpack.c.l.b16 %v162
    %v197 = vunpack.c.l.b16 %v163
    %v198 = vunpack.c.l.b16 %v164
    %v199 = vunpack.c.l.b16 %v165
    %v200 = vunpack.c.l.b16 %v166
    %v201 = vunpack.c.l.b16 %v167
    %v202 = vunpack.c.l.b16 %v168
    %v203 = vunpack.c.l.b16 %v169
    %v204 = vunpack.c.l.b16 %v170
    %v205 = vunpack.c.l.b16 %v171
    %v206 = vunpack.c.l.b16 %v172
    %v207 = vunpack.c.l.b16 %v173
    %v208 = vunpack.c.l.b16 %v174
    %v209 = vunpack.c.l.b16 %v175
    %v210 = vunpack.c.l.b16 %v176
    %v211 = vunpack.c.l.b16 %v177
    %v212 = vpack.c.b16 %v197, %v196
    %v213 = vpack.c.b16 %v199, %v198
    %v214 = vpack.c.b16 %v201, %v200
    %v215 = vpack.c.b16 %v203, %v202
    %v216 = vpack.c.b16 %v205, %v204
    %v217 = vpack.c.b16 %v207, %v206
    %v218 = vpack.c.b16 %v209, %v208
    %v219 = vpack.c.b16 %v211, %v210
    %228 = vmatpush.bf16.msra.mxu0 %v219
    %229 = vmatpush.bf16.msra.mxu0 %v218
    %230 = vmatpush.bf16.msra.mxu0 %v217
    %231 = vmatpush.bf16.msra.mxu0 %v216
    %232 = vmatpush.bf16.msra.mxu0 %v215
    %233 = vmatpush.bf16.msra.mxu0 %v214
    %234 = vmatpush.bf16.msra.mxu0 %v213
    %235 = vmatpush.bf16.msra.mxu0 %v212
    %236 = vmatmul.bf16.gmra.mxu0 %v179
    %v237 = vpop.f32.mrf.mxu0
    %v238 = vadd.f32 0.0, %v237
    %v239 = vpop.f32.mrf.mxu0
    %240 = vdwg.mxu0
    %v241 = vadd.f32 %v178, %v238
    %vm242 = vcmask 269312
    %243 = vst.msk [vmem:[#allocation2] sm:$0xff] %vm242, %v241
    %v244 = vld [vmem:[#allocation3] sm:$0xff]
    %v245 = vpack.c.bf16 %v161, %v161
    %246 = vmatpush.bf16.msra.mxu0 %v219
    %247 = vmatpush.bf16.msra.mxu0 %v218
    %248 = vmatpush.bf16.msra.mxu0 %v217
    %249 = vmatpush.bf16.msra.mxu0 %v216
    %250 = vmatpush.bf16.msra.mxu0 %v215
    %251 = vmatpush.bf16.msra.mxu0 %v214
    %252 = vmatpush.bf16.msra.mxu0 %v213
    %253 = vmatpush.bf16.msra.mxu0 %v212
    %254 = vmatmul.bf16.gmra.mxu0 %v245
    %v255 = vpop.f32.mrf.mxu0
    %v256 = vadd.f32 0.0, %v255
    %v257 = vpop.f32.mrf.mxu0
    %258 = vdwg.mxu0
    %v259 = vadd.f32 %v244, %v256
    %260 = vst.msk [vmem:[#allocation3] sm:$0xff] %vm242, %v259
    // Predicated region
    $region26: #{tpu_custom_call.1} parent=1 // pred_check
      %p261 = pneg %p21
    $region27: #{tpu_custom_call.1} parent=1 // pred_check_branch
      %263 = sbr.rel (%p261) target = $region29
    $region28: #{tpu_custom_call.1} parent=1 // pred_region
      %v264 = vld [vmem:[#allocation2] sm:$0xff]
      %v265 = vmax.f32 %v264, 1.0
      %267 = vset.pattern.permute.xlu0 32
      %268 = vperm.xlu0 %267, %v265
      %v269 = vpop.permute.xlu0 %268
      %v271 = vrcp.pop %v269
      %v272 = vmul.f32 %v269, %v271
      %v273 = vsub.f32 1.0, %v272
      %v274 = vmul.f32 %v271, %v273
      %v275 = vadd.f32 %v271, %v274
      %vm276 = vweird.f32 %v269
      %vm277 = vweird.f32 %v271
      %vm278 = vmor %vm276, %vm277
      %v279 = vsel %vm278, %v271, %v275
      %v280 = vand.u32 2147483647, %v269
      %vm281 = vcmp.eq.f32.partialorder %v280, 8.507059e+37
      %v282 = vand.u32 %v269, 2147483648
      %v283 = vor.u32 1.1754944e-38, %v282
      %v284 = vsel %vm281, %v283, %v279
      %v285 = vmul.f32 %v264, %v284
      %v286 = vld [vmem:[#allocation3] sm:$0xff]
      %v287 = vadd.f32 %v285, %v286
      %v288 = vld [vmem:[%s3] sm:$0xff]
      %v289 = vld [vmem:[%s3 + $0x8] sm:$0xff]
      %v290 = vld [vmem:[%s3 + $0x10] sm:$0xff]
      %v291 = vld [vmem:[%s3 + $0x18] sm:$0xff]
      %v292 = vld [vmem:[%s3 + $0x20] sm:$0x1]
      %v293 = vld [vmem:[%s4] sm:$0x1]
      %v295 = vperm.slane %v293, 0
      %v298 = vsel %vm242, %v287, 0
      %vm300 = vcmask 1040384
      %v302 = vsel %vm300, %v292, 0
      %304 = vmatpush.msra.mxu0 0.0
      %305 = vmatpush.msra.mxu0 0.0
      %306 = vmatpush.msra.mxu0 0.0
      %307 = vmatpush.msra.mxu0 0.0
      %308 = vmatpush.msra.mxu0 0.0
      %309 = vmatpush.msra.mxu0 0.0
      %310 = vmatpush.msra.mxu0 0.0
      %311 = vmatpush.msra.mxu0 0.0
      %312 = vmatpush.msra.mxu0 0.0
      %313 = vmatpush.msra.mxu0 0.0
      %314 = vmatpush.msra.mxu0 0.0
      %315 = vmatpush.msra.mxu0 %v302
      %316 = vmatpush.msra.mxu0 %v291
      %317 = vmatpush.msra.mxu0 %v290
      %318 = vmatpush.msra.mxu0 %v289
      %319 = vmatpush.msra.mxu0 %v288
      %320 = vmatmul.f32.gmra.mxu0 %v298
      %v321 = vpop.f32.mrf.mxu0
      %v322 = vadd.f32 %v295, %v321
      %323 = vdwg.mxu0
      %324 = vst [vmem:[#allocation4] sm:$0xff] %v322
    $region29: #{tpu_custom_call.1} parent=1 // pred_fallthru
      _
    // Predicated region
    $region30: #{tpu_custom_call.1} parent=1 // pred_check
      _
    $region31: #{tpu_custom_call.1} parent=1 // pred_check_branch
      %326 = sbr.rel (0) target = $region33
    $region32: #{tpu_custom_call.1} parent=1 // pred_region
      %328 = vsyncadd [#allocation5], 0
      %s330 = sshll.u32 [#allocation4], 4
      %s331 = int_to_ptr.vmem [resolvable:$true] %s330
      %s332 = sshll.u32 %s5, 4
      %s333 = int_to_ptr.hbm [resolvable:$true] %s332
      %335 = dma.vmem_to_hbm [thread:$0]  %s331, 128, %s333, [#allocation5]
    $region33: #{tpu_custom_call.1} parent=1 // pred_fallthru
      _
    // Predicated region
    $region34: #{tpu_custom_call.1} parent=1 // pred_check
      _
    $region35: #{tpu_custom_call.1} parent=1 // pred_check_branch
      %337 = sbr.rel (0) target = $region37
    $region36: #{tpu_custom_call.1} parent=1 // pred_region
      %339 = dma.done [#allocation5], 128
    $region37: #{tpu_custom_call.1} parent=1 // pred_fallthru
      _
    %340 = vsyncpa [#allocation5], 1

</llo_original>
